<compile_context>
chip_gen: v7x
topology: tpu7x:2x2x1
jax: 0.10.0
libtpu: 0.0.40
codegen_flags: <defaults>
</compile_context>

<pallas_src>
import math

import jax
import jax.numpy as jnp
from jax.experimental import pallas as pl
from jax.experimental.pallas import tpu as pltpu


# --------------------------------------------------------------------------- #
# Kernels
# --------------------------------------------------------------------------- #
def _adj_compute(fc_ref, yr, yc, mem, out_ref):
    """Shared body. `yr` is already scaled by 1/sqrt(C); `yc`/`mem` are raw."""
    bb, tn, c = yr.shape
    tm = mem.shape[1]

    # a1: a single MXU call over all bb*tn rows (f32 accumulation).
    d1 = jnp.dot(yr.reshape(bb * tn, c), mem,
                 preferred_element_type=jnp.float32).reshape(bb, tn, tm)
    # a2: batched (row-tile x col-tile) product, contraction over channels.
    d2 = jax.lax.dot_general(yr, yc, (((2,), (2,)), ((0,), (0,))),
                             preferred_element_type=jnp.float32)   # (bb, tn, tm)

    a1 = jnp.tanh(d1)
    a2 = jnp.tanh(d2)

    w0 = fc_ref[0]
    w1 = fc_ref[1]
    b = fc_ref[2]
    z = w0 * a1 + w1 * a2 + b
    # sigmoid(z) == 0.5 * tanh(0.5 * z) + 0.5  (one EUP push, no full-precision divide)
    out_ref[...] = (0.5 * jnp.tanh(0.5 * z) + 0.5).astype(out_ref.dtype)


def _adj_kernel_shared(fc_ref, y_ref, mem_ref, out_ref):
    # Row and column operands are the same full-N block (no row/col tiling):
    # y is DMA'd only once per batch block.
    y = y_ref[...]
    scale = 1.0 / math.sqrt(y.shape[-1])
    _adj_compute(fc_ref, y * scale, y, mem_ref[...], out_ref)


def _adj_kernel_split(fc_ref, yr_ref, yc_ref, mem_ref, out_ref):
    # Separate row tile (tn) and column tile (tm) views of y.
    yr = yr_ref[...]
    scale = 1.0 / math.sqrt(yr.shape[-1])
    _adj_compute(fc_ref, yr * scale, yc_ref[...], mem_ref[...], out_ref)


# --------------------------------------------------------------------------- #
# Tiling / VMEM planner
# --------------------------------------------------------------------------- #
def _round_up(a, b):
    return -(-a // b) * b


def _vmem_capacity_bytes():
    try:
        info = pltpu.get_tpu_info()
        cap = int(getattr(info, "vmem_capacity_bytes", 0) or 0)
        if cap > 0:
            return cap
    except Exception:
        pass
    return 64 * 1024 * 1024   # conservative default (v7x per-TensorCore VMEM)


def _largest_divisor_tile(n, g, target):
    """Largest multiple-of-g divisor of n (n % g == 0) that is <= target."""
    t = min(n, max(g, target - target % g))
    for cand in range(t, g - 1, -g):
        if n % cand == 0:
            return cand
    return g


def _plan_tiles(N, C, B, elem_bytes, out_bytes, vmem_cap, row_tile, col_tile):
    """Return (n_pad, bb, tn, tm, vmem_limit_bytes)."""
    g = 16 if elem_bytes == 2 else 8                      # sublane granularity
    budget = int(0.70 * vmem_cap)                         # per-step working-set budget
    row_target = 512 if vmem_cap >= (100 << 20) else 256  # v5e/v6e vs v7x

    def step(bb, tn, tm):
        # double-buffered y row + y col operands (pessimistic: split path),
        # double-buffered memory tile, double-buffered output tile,
        # plus ~3 live f32 (tn, tm) intermediates (a1/a2/z).
        return (2 * bb * (tn + tm) * C * elem_bytes
                + 2 * C * tm * elem_bytes
                + 2 * bb * tn * tm * out_bytes
                + 3 * bb * tn * tm * 4)

    if row_tile is not None or col_tile is not None:
        # Explicit override (testing / tuning).
        tn = int(row_tile) if row_tile is not None else min(row_target, _round_up(N, g))
        tn = max(g, _round_up(tn, g))
        if col_tile is not None:
            tm = int(col_tile)
            if tm % 128:
                raise ValueError("col_tile must be a multiple of 128")
            n_pad = _round_up(N, math.lcm(tn, tm))
        else:
            n_pad = _round_up(N, tn)
            tm = n_pad
    else:
        n_pad = _round_up(N, g)
        if step(1, min(row_target, n_pad), n_pad) <= budget:
            # Columns untiled: one lane-dense (tn, n_pad) store per step.
            tn = _largest_divisor_tile(n_pad, g, row_target)
            if n_pad > 128 and tn < max(g, row_target // 4):
                # Poor divisor structure (prime-ish N): pad rows to a 128 tile instead.
                tn = min(128, row_target)
                n_pad = _round_up(N, tn)
            tm = n_pad
        else:
            # Large graph: tile the column (memory / a2) axis too. Power-of-two tiles,
            # pad N to their max so both divide n_pad exactly.
            tm = 512
            while tm > 128 and step(1, row_target, tm) > budget:
                tm //= 2
            tn = row_target
            while tn > g and step(1, tn, tm) > budget:
                tn //= 2
            tn = max(g, tn)
            n_pad = _round_up(N, max(tn, tm))

    # Pack several batch elements per step when the whole (tiny) graph is one block.
    bb = 1
    if tn == n_pad and tm == n_pad and n_pad <= 64:
        bb = min(B, max(1, 128 // n_pad))
        while B % bb:
            bb -= 1

    step_bytes = step(bb, tn, tm)
    vmem_limit = int(min(0.95 * vmem_cap,
                         max(32 * 1024 * 1024, 1.5 * step_bytes + (4 << 20))))
    return n_pad, bb, tn, tm, vmem_limit


# --------------------------------------------------------------------------- #
# Public wrapper
# --------------------------------------------------------------------------- #
def adj_generator(x, memory, fc_weight, fc_bias, *, out_dtype=None,
                  use_bf16_matmul=False, row_tile=None, col_tile=None):
    """Pallas equivalent of Adj_Generator.forward.

    x: (B, N, L, C) or (B, N, C);  memory: (C, M) with M == N (num_nodes).
    Returns the (B, N, N) adjacency (dtype follows x unless out_dtype is given).
    """
    if x.ndim == 3:
        y = x                                            # (B, N, C)
    elif x.ndim == 4:
        # Hoisted L-sum (f32 accumulation), keeping the native dtype for DMA / MXU.
        y = jnp.sum(x.astype(jnp.float32), axis=2).astype(x.dtype)
    else:
        raise ValueError(f"expected 3-D or 4-D input, got shape {x.shape}")

    out_dtype = jnp.dtype(out_dtype) if out_dtype is not None else jnp.dtype(x.dtype)

    B, N, C = y.shape
    Cm, M = memory.shape
    if Cm != C:
        raise ValueError("memory channel dim must match input channels")
    if M != N:
        raise ValueError("num_nodes (memory columns) must equal N for the 2-way concat")

    if use_bf16_matmul:
        # Opt-in fast path: bf16 MXU operands, f32 accumulation / epilogue (small drift).
        y = y.astype(jnp.bfloat16)
        memory = memory.astype(jnp.bfloat16)
    else:
        cdt = jnp.result_type(y.dtype, memory.dtype)
        y = y.astype(cdt)
        memory = memory.astype(cdt)

    elem_bytes = jnp.dtype(y.dtype).itemsize
    out_bytes = out_dtype.itemsize
    vmem_cap = _vmem_capacity_bytes()

    n_pad, bb, tn, tm, vmem_limit = _plan_tiles(
        N, C, B, elem_bytes, out_bytes, vmem_cap, row_tile, col_tile)

    if n_pad != N:
        y = jnp.pad(y, ((0, 0), (0, n_pad - N), (0, 0)))
        memory = jnp.pad(memory, ((0, 0), (0, n_pad - N)))

    fc_params = jnp.concatenate(
        [fc_weight.reshape(-1), fc_bias.reshape(-1)]).astype(jnp.float32)   # (3,)

    grid = (B // bb, n_pad // tn, n_pad // tm)
    shared_y = (tn == n_pad and tm == n_pad)

    cost = pl.CostEstimate(
        flops=int(4 * B * n_pad * n_pad * C),
        transcendentals=int(3 * B * n_pad * n_pad),
        bytes_accessed=int(B * n_pad * C * elem_bytes * (1 if shared_y else 2)
                           + C * n_pad * elem_bytes
                           + B * n_pad * n_pad * out_bytes + 16),
    )

    common = dict(
        out_shape=jax.ShapeDtypeStruct((B, n_pad, n_pad), out_dtype),
        grid=grid,
        out_specs=pl.BlockSpec((bb, tn, tm), lambda b, i, j: (b, i, j)),
        compiler_params=pltpu.CompilerParams(
            dimension_semantics=("parallel", "parallel", "parallel"),
            vmem_limit_bytes=int(vmem_limit)),
        cost_estimate=cost,
    )

    if shared_y:
        out = pl.pallas_call(
            _adj_kernel_shared,
            in_specs=[
                pl.BlockSpec(memory_space=pltpu.MemorySpace.SMEM),      # fc params
                pl.BlockSpec((bb, n_pad, C), lambda b, i, j: (b, 0, 0)),  # y (full N)
                pl.BlockSpec((C, tm), lambda b, i, j: (0, j)),          # memory
            ],
            **common,
        )(fc_params, y, memory)
    else:
        out = pl.pallas_call(
            _adj_kernel_split,
            in_specs=[
                pl.BlockSpec(memory_space=pltpu.MemorySpace.SMEM),      # fc params
                pl.BlockSpec((bb, tn, C), lambda b, i, j: (b, i, 0)),   # y row tile
                pl.BlockSpec((bb, tm, C), lambda b, i, j: (b, j, 0)),   # y col tile
                pl.BlockSpec((C, tm), lambda b, i, j: (0, j)),          # memory tile
            ],
            **common,
        )(fc_params, y, y, memory)

    if n_pad != N:
        out = out[:, :N, :N]
    return out


# --------------------------------------------------------------------------- #
# Pure-JAX reference (transcription of the PyTorch forward) + tests
# --------------------------------------------------------------------------- #
def _reference(x, memory, fc_weight, fc_bias):
    if x.ndim == 3:
        xp = jnp.transpose(x, (0, 2, 1))                 # (B, C, N)
        C = xp.shape[1]
        a1 = jnp.tanh(jnp.einsum('bcn,cm->bnm', xp, memory) / math.sqrt(C))
        a2 = jnp.tanh(jnp.einsum('bcn,bcm->bnm', xp, xp) / math.sqrt(C))
    else:
        xp = jnp.transpose(x, (0, 3, 1, 2))              # (B, C, N, L)
        C = xp.shape[1]
        a1 = jnp.tanh(jnp.einsum('bcnl,cm->bnm', xp, memory) / math.sqrt(C))
        xs = xp.sum(-1)
        a2 = jnp.tanh(jnp.einsum('bcn,bcm->bnm', xs, xs) / math.sqrt(C))
    adj = jnp.stack([a1, a2], axis=-1)                   # (B, N, M, 2)
    out = adj @ fc_weight.T + fc_bias                    # (B, N, M, 1)
    return jax.nn.sigmoid(out[..., 0])


if __name__ == "__main__":
    key = jax.random.PRNGKey(0)
    k_x, k_mem, k_w, k_b, k_x2, k_mem2 = jax.random.split(key, 6)

    # shared nn.Linear(2, 1) parameters
    bound = 1.0 / math.sqrt(2.0)
    fc_weight = jax.random.uniform(k_w, (1, 2), jnp.float32, -bound, bound)
    fc_bias = jax.random.uniform(k_b, (1,), jnp.float32, -bound, bound)

    # --- 4-D branch: (B, N, L, C), tiny shapes -> batch-packed single-block path ---
    B, N, L, C = 2, 16, 8, 32
    x = jax.random.normal(k_x, (B, N, L, C), dtype=jnp.float32)
    memory = jax.random.normal(k_mem, (C, N), dtype=jnp.float32)

    out = jax.block_until_ready(adj_generator(x, memory, fc_weight, fc_bias))
    ref = _reference(x, memory, fc_weight, fc_bias)
    assert out.shape == (B, N, N), out.shape
    assert jnp.allclose(out, ref, atol=1e-4, rtol=1e-4), (
        float(jnp.max(jnp.abs(out - ref))))

    # opt-in bf16 MXU fast path (looser tolerance; output stays f32)
    out_bf = jax.block_until_ready(
        adj_generator(x, memory, fc_weight, fc_bias, use_bf16_matmul=True))
    assert out_bf.shape == (B, N, N) and out_bf.dtype == jnp.float32
    assert jnp.allclose(out_bf, ref, atol=1e-1), (
        float(jnp.max(jnp.abs(out_bf - ref))))

    # --- 3-D branch: (B, N, C), larger N -> auto plan (full-width columns) --------
    B2, N2, C2 = 2, 320, 64
    x2 = jax.random.normal(k_x2, (B2, N2, C2), dtype=jnp.float32)
    memory2 = jax.random.normal(k_mem2, (C2, N2), dtype=jnp.float32)

    out2 = jax.block_until_ready(adj_generator(x2, memory2, fc_weight, fc_bias))
    ref2 = _reference(x2, memory2, fc_weight, fc_bias)
    assert out2.shape == (B2, N2, N2), out2.shape
    assert jnp.allclose(out2, ref2, atol=1e-4, rtol=1e-4), (
        float(jnp.max(jnp.abs(out2 - ref2))))

    # --- same data, forced row + column tiling with padding (large-graph path) ----
    out3 = jax.block_until_ready(
        adj_generator(x2, memory2, fc_weight, fc_bias, row_tile=128, col_tile=128))
    assert out3.shape == (B2, N2, N2), out3.shape
    assert jnp.allclose(out3, ref2, atol=1e-4, rtol=1e-4), (
        float(jnp.max(jnp.abs(out3 - ref2))))

    print("KERNEL_OK")
</pallas_src>

<mosaic_0001>
module attributes {stable_mosaic.version = 11 : i64} {
  func.func @_adj_kernel_shared(%arg0: i32, %arg1: i32, %arg2: i32, %arg3: memref<3xf32, #tpu.memory_space<smem>>, %arg4: memref<2x16x32xf32, #tpu.memory_space<vmem>>, %arg5: memref<32x16xf32, #tpu.memory_space<vmem>>, %arg6: memref<2x16x16xf32, #tpu.memory_space<vmem>>) attributes {dimension_semantics = [#tpu.dimension_semantics<parallel>, #tpu.dimension_semantics<parallel>, #tpu.dimension_semantics<parallel>], iteration_bounds = array<i64: 1, 1, 1>, scalar_prefetch = 0 : i64, scratch_operands = 0 : i64, tpu.core_type = #tpu.core_type<tc>, window_params = [{transform_indices = @transform_0, window_bounds = array<i64: 3>}, {transform_indices = @transform_1, window_bounds = array<i64: 2, 16, 32>}, {transform_indices = @transform_2, window_bounds = array<i64: 32, 16>}, {transform_indices = @transform_3, window_bounds = array<i64: 2, 16, 16>}]} {
    %c0 = arith.constant 0 : index
    %c0_0 = arith.constant 0 : index
    %c0_1 = arith.constant 0 : index
    %0 = vector.load %arg4[%c0, %c0_0, %c0_1] : memref<2x16x32xf32, #tpu.memory_space<vmem>>, vector<2x16x32xf32>
    %cst = arith.constant 0.176776692 : f32
    %1 = vector.broadcast %cst : f32 to vector<2x16x32xf32>
    %2 = arith.mulf %0, %1 : vector<2x16x32xf32>
    %c0_2 = arith.constant 0 : index
    %c0_3 = arith.constant 0 : index
    %3 = vector.load %arg5[%c0_2, %c0_3] : memref<32x16xf32, #tpu.memory_space<vmem>>, vector<32x16xf32>
    %4 = vector.shape_cast %2 : vector<2x16x32xf32> to vector<32x32xf32>
    %cst_4 = arith.constant dense<0.000000e+00> : vector<32x16xf32>
    %5 = tpu.matmul %4, %3, %cst_4 {dimension_numbers = #tpu.dot_dimension_numbers<[1], [0], [0], [1], [0, 0, 1, 1], [], []>} : vector<32x32xf32>, vector<32x16xf32>, vector<32x16xf32> -> vector<32x16xf32>
    %6 = vector.shape_cast %5 : vector<32x16xf32> to vector<2x16x16xf32>
    %cst_5 = arith.constant dense<0.000000e+00> : vector<2x16x16xf32>
    %7 = tpu.matmul %2, %0, %cst_5 {dimension_numbers = #tpu.dot_dimension_numbers<[2], [2], [1], [1], [0, 0, 0, 1, 1, 1], [0], [0]>} : vector<2x16x32xf32>, vector<2x16x32xf32>, vector<2x16x16xf32> -> vector<2x16x16xf32>
    %8 = math.tanh %6 : vector<2x16x16xf32>
    %9 = math.tanh %7 : vector<2x16x16xf32>
    %c0_6 = arith.constant 0 : index
    %10 = memref.load %arg3[%c0_6] : memref<3xf32, #tpu.memory_space<smem>>
    %c1 = arith.constant 1 : index
    %11 = memref.load %arg3[%c1] : memref<3xf32, #tpu.memory_space<smem>>
    %c2 = arith.constant 2 : index
    %12 = memref.load %arg3[%c2] : memref<3xf32, #tpu.memory_space<smem>>
    %13 = vector.broadcast %10 : f32 to vector<2x16x16xf32>
    %14 = arith.mulf %13, %8 : vector<2x16x16xf32>
    %15 = vector.broadcast %11 : f32 to vector<2x16x16xf32>
    %16 = arith.mulf %15, %9 : vector<2x16x16xf32>
    %17 = arith.addf %14, %16 : vector<2x16x16xf32>
    %18 = vector.broadcast %12 : f32 to vector<2x16x16xf32>
    %19 = arith.addf %17, %18 : vector<2x16x16xf32>
    %cst_7 = arith.constant 5.000000e-01 : f32
    %20 = vector.broadcast %cst_7 : f32 to vector<2x16x16xf32>
    %21 = arith.mulf %20, %19 : vector<2x16x16xf32>
    %22 = math.tanh %21 : vector<2x16x16xf32>
    %cst_8 = arith.constant 5.000000e-01 : f32
    %23 = vector.broadcast %cst_8 : f32 to vector<2x16x16xf32>
    %24 = arith.mulf %23, %22 : vector<2x16x16xf32>
    %cst_9 = arith.constant 5.000000e-01 : f32
    %25 = vector.broadcast %cst_9 : f32 to vector<2x16x16xf32>
    %26 = arith.addf %24, %25 : vector<2x16x16xf32>
    %c0_10 = arith.constant 0 : index
    %c0_11 = arith.constant 0 : index
    %c0_12 = arith.constant 0 : index
    %27 = vector.load %arg6[%c0_10, %c0_11, %c0_12] : memref<2x16x16xf32, #tpu.memory_space<vmem>>, vector<2x16x16xf32>
    tpu.vector_store %arg6[%c0_10, %c0_11, %c0_12], %26 {strides = array<i32>} : memref<2x16x16xf32, #tpu.memory_space<vmem>>, vector<2x16x16xf32>,
    return
  }
  func.func @transform_0(%arg0: i32, %arg1: i32, %arg2: i32) -> i32 {
    %c0_i32 = arith.constant 0 : i32
    %c0_i32_0 = arith.constant 0 : i32
    return %c0_i32 : i32
  }
  func.func @transform_1(%arg0: i32, %arg1: i32, %arg2: i32) -> (i32, i32, i32) {
    %c0_i32 = arith.constant 0 : i32
    %c0_i32_0 = arith.constant 0 : i32
    %c0_i32_1 = arith.constant 0 : i32
    return %arg0, %c0_i32, %c0_i32_0 : i32, i32, i32
  }
  func.func @transform_2(%arg0: i32, %arg1: i32, %arg2: i32) -> (i32, i32) {
    %c0_i32 = arith.constant 0 : i32
    %c0_i32_0 = arith.constant 0 : i32
    return %c0_i32, %arg2 : i32, i32
  }
  func.func @transform_3(%arg0: i32, %arg1: i32, %arg2: i32) -> (i32, i32, i32) {
    %c0_i32 = arith.constant 0 : i32
    return %arg0, %arg1, %arg2 : i32, i32, i32
  }
}

</mosaic_0001>

<llo_original>
// kernel: tpu_custom_call.1
$region0: #{tpu_custom_call.1}
  #allocation0 [shape = 'u32[]', space=smem, size = 0x4, offset = 0x4, fixed_abs, tag = 'smem constant byte address 0x4 - core index']
  #allocation1 [shape = 'u32[144,128]{1,0:T(1,128)}', space=vmem, size = 0x12000, scoped, tag = 'internal scratch']
  %s0 = inlined_call_operand.vmem [shape: f32[3], index: 0, kind: input, shape index: {}]
  %s1 = inlined_call_operand.vmem [shape: f32[2,16,32], index: 1, kind: input, shape index: {}]
  %s2 = inlined_call_operand.vmem [shape: f32[32,16], index: 2, kind: input, shape index: {}]
  %s3 = inlined_call_operand.hbm [shape: f32[2,16,16], index: 3, kind: output, shape index: {}]
  %s4 = sld [smem:[#allocation0]]
  $region26: #{tpu_custom_call.1} parent=0
    _
  %s6 = ssub.s32 1, %s4
  %s7 = scalar_select 0, %s6, %s4
  $region1: #{tpu_custom_call.1} parent=0
    #allocation2 [shape = 'u8[512]{0}', space=smem, size = 0x200, scoped, tag = 'input window, operand 0, single buffered']
    #allocation3 [shape = 's32[1]{0}', space=sflag, size = 0x4, scoped, tag = 'scoped memory for tpu_custom_call.1']
    #allocation4 [shape = 's32[1]{0}', space=sflag, size = 0x4, scoped, tag = 'scoped memory for tpu_custom_call.1']
    #allocation5 [shape = 'u8[16384]{0}', space=vmem, size = 0x4000, scoped, tag = 'output window, operand 0, single buffered']
    %8 = vsyncpa [#allocation4], 0
    %9 = vsyncpa [#allocation3], 0
    // Predicated region
    $region2: #{tpu_custom_call.1} parent=1 // pred_check
      _
    $region3: #{tpu_custom_call.1} parent=1 // pred_check_branch
      %11 = sbr.rel (0) target = $region5
    $region4: #{tpu_custom_call.1} parent=1 // pred_region
      %s13 = ssub.s32 16, 16
      %14 = vsyncadd [#allocation4], %s13
      %s16 = sshll.u32 %s0, 4
      %s17 = int_to_ptr.vmem [resolvable:$true] %s16
      %19 = dma.vmem_to_smem %s17, 16, [#allocation2], [#allocation4]
    $region5: #{tpu_custom_call.1} parent=1 // pred_fallthru
      _
    // Predicated region
    $region6: #{tpu_custom_call.1} parent=1 // pred_check
      _
    $region7: #{tpu_custom_call.1} parent=1 // pred_check_branch
      %21 = sbr.rel (0) target = $region9
    $region8: #{tpu_custom_call.1} parent=1 // pred_region
      _
    $region9: #{tpu_custom_call.1} parent=1 // pred_fallthru
      _
    // Predicated region
    $region10: #{tpu_custom_call.1} parent=1 // pred_check
      _
    $region11: #{tpu_custom_call.1} parent=1 // pred_check_branch
      %23 = sbr.rel (0) target = $region13
    $region12: #{tpu_custom_call.1} parent=1 // pred_region
      _
    $region13: #{tpu_custom_call.1} parent=1 // pred_fallthru
      _
    // Predicated region
    $region14: #{tpu_custom_call.1} parent=1 // pred_check
      _
    $region15: #{tpu_custom_call.1} parent=1 // pred_check_branch
      %25 = sbr.rel (0) target = $region17
    $region16: #{tpu_custom_call.1} parent=1 // pred_region
      %26 = dma.done [#allocation4], 16
    $region17: #{tpu_custom_call.1} parent=1 // pred_fallthru
      _
    %27 = sfence
    %v28 = vld [vmem:[%s1] sm:$0xff]
    %v29 = vld [vmem:[%s1 + $0x8] sm:$0xff]
    %v30 = vld [vmem:[%s1 + $0x10] sm:$0xff]
    %v31 = vld [vmem:[%s1 + $0x18] sm:$0xff]
    %v32 = vmul.f32 %v28, 0.17677669
    %v33 = vmul.f32 %v29, 0.17677669
    %v34 = vmul.f32 %v30, 0.17677669
    %v35 = vmul.f32 %v31, 0.17677669
    %v36 = vld [vmem:[%s2] sm:$0xff]
    %v37 = vld [vmem:[%s2 + $0x8] sm:$0xff]
    %v38 = vld [vmem:[%s2 + $0x10] sm:$0xff]
    %v39 = vld [vmem:[%s2 + $0x18] sm:$0xff]
    %vm40 = vcmask 261120
    %v42 = vsel %vm40, %v32, 0
    %v45 = vsel %vm40, %v33, 0
    %v48 = vsel %vm40, %v34, 0
    %v51 = vsel %vm40, %v35, 0
    %53 = vmatprep.subr.mxu0 0.0
    %54 = vmatpush1.msra.mxu0 %v36
    %55 = vmatprep.subr.mxu0 0.0
    %56 = vmatpush1.msra.mxu0 %v37
    %57 = vmatprep.subr.mxu0 0.0
    %58 = vmatpush1.msra.mxu0 %v38
    %59 = vmatprep.subr.mxu0 0.0
    %60 = vmatpush1.msra.mxu0 %v39
    %61 = vmatprep.subr.mxu0 0.0
    %62 = vmatpush1.msra.mxu0 0.0
    %63 = vmatprep.subr.mxu0 0.0
    %64 = vmatpush1.msra.mxu0 0.0
    %65 = vmatprep.subr.mxu0 0.0
    %66 = vmatpush1.msra.mxu0 0.0
    %67 = vmatprep.subr.mxu0 0.0
    %68 = vmatpush1.msra.mxu0 0.0
    %69 = vmatprep.subr.mxu0 0.0
    %70 = vmatpush1.msra.mxu0 0.0
    %71 = vmatprep.subr.mxu0 0.0
    %72 = vmatpush1.msra.mxu0 0.0
    %73 = vmatprep.subr.mxu0 0.0
    %74 = vmatpush1.msra.mxu0 0.0
    %75 = vmatprep.subr.mxu0 0.0
    %76 = vmatpush1.msra.mxu0 0.0
    %77 = vmatprep.subr.mxu0 0.0
    %78 = vmatpush1.msra.mxu0 0.0
    %79 = vmatprep.subr.mxu0 0.0
    %80 = vmatpush1.msra.mxu0 0.0
    %81 = vmatprep.subr.mxu0 0.0
    %82 = vmatpush1.msra.mxu0 0.0
    %83 = vmatprep.subr.mxu0 0.0
    %84 = vmatpush1.msra.mxu0 0.0
    %85 = vmatprep.subr.mxu0 0.0
    %86 = vmatpush1.msra.mxu0 0.0
    %87 = vmatprep.subr.mxu0 0.0
    %88 = vmatpush1.msra.mxu0 0.0
    %89 = vmatprep.subr.mxu0 0.0
    %90 = vmatpush1.msra.mxu0 0.0
    %91 = vmatprep.subr.mxu0 0.0
    %92 = vmatpush1.msra.mxu0 0.0
    %93 = vmatprep.subr.mxu0 0.0
    %94 = vmatpush1.msra.mxu0 0.0
    %95 = vmatprep.subr.mxu0 0.0
    %96 = vmatpush1.msra.mxu0 0.0
    %97 = vmatprep.subr.mxu0 0.0
    %98 = vmatpush1.msra.mxu0 0.0
    %99 = vmatprep.subr.mxu0 0.0
    %100 = vmatpush1.msra.mxu0 0.0
    %101 = vmatprep.subr.mxu0 0.0
    %102 = vmatpush1.msra.mxu0 0.0
    %103 = vmatprep.subr.mxu0 0.0
    %104 = vmatpush1.msra.mxu0 0.0
    %105 = vmatprep.subr.mxu0 0.0
    %106 = vmatpush1.msra.mxu0 0.0
    %107 = vmatprep.subr.mxu0 0.0
    %108 = vmatpush1.msra.mxu0 0.0
    %109 = vmatprep.subr.mxu0 0.0
    %110 = vmatpush1.msra.mxu0 0.0
    %111 = vmatprep.subr.mxu0 0.0
    %112 = vmatpush1.msra.mxu0 0.0
    %113 = vmatprep.subr.mxu0 0.0
    %114 = vmatpush1.msra.mxu0 0.0
    %115 = vmatprep.subr.mxu0 0.0
    %116 = vmatpush1.msra.mxu0 0.0
    %117 = vmatprep.mubr.f32.mxu0 0.0
    %118 = vmatmul.mubr.f32.gmra.mrb[0].mxu0 %v42
    %v119 = vpop.f32.mrb[0].mxu0
    %v120 = vadd.f32 0.0, %v119
    %v121 = vpop.f32.mrb[0].mxu0
    %122 = vmatprep.mubr.f32.mxu0 0.0
    %123 = vmatmul.mubr.f32.gmra.mrb[0].mxu0 %v45
    %v124 = vpop.f32.mrb[0].mxu0
    %v125 = vadd.f32 0.0, %v124
    %v126 = vpop.f32.mrb[0].mxu0
    %127 = vmatprep.mubr.f32.mxu0 0.0
    %128 = vmatmul.mubr.f32.gmra.mrb[0].mxu0 %v48
    %v129 = vpop.f32.mrb[0].mxu0
    %v130 = vadd.f32 0.0, %v129
    %v131 = vpop.f32.mrb[0].mxu0
    %132 = vmatprep.mubr.f32.mxu0 0.0
    %133 = vmatmul.mubr.f32.gmra.mrb[0].mxu0 %v51
    %v134 = vpop.f32.mrb[0].mxu0
    %v135 = vadd.f32 0.0, %v134
    %v136 = vpop.f32.mrb[0].mxu0
    %137 = vdwg.mxu0
    %v139 = vsel %vm40, %v28, 0
    %v142 = vsel %vm40, %v29, 0
    %144 = vmatprep.subr.mxu0 0.0
    %145 = vmatpush1.xpose.msra.mxu0 %v139
    %146 = vmatprep.subr.mxu0 0.0
    %147 = vmatpush1.xpose.msra.mxu0 %v142
    %148 = vmatprep.subr.mxu0 0.0
    %149 = vmatpush1.xpose.msra.mxu0 0.0
    %150 = vmatprep.subr.mxu0 0.0
    %151 = vmatpush1.xpose.msra.mxu0 0.0
    %152 = vmatprep.subr.mxu0 0.0
    %153 = vmatpush1.xpose.msra.mxu0 0.0
    %154 = vmatprep.subr.mxu0 0.0
    %155 = vmatpush1.xpose.msra.mxu0 0.0
    %156 = vmatprep.subr.mxu0 0.0
    %157 = vmatpush1.xpose.msra.mxu0 0.0
    %158 = vmatprep.subr.mxu0 0.0
    %159 = vmatpush1.xpose.msra.mxu0 0.0
    %160 = vmatprep.subr.mxu0 0.0
    %161 = vmatpush1.xpose.msra.mxu0 0.0
    %162 = vmatprep.subr.mxu0 0.0
    %163 = vmatpush1.xpose.msra.mxu0 0.0
    %164 = vmatprep.subr.mxu0 0.0
    %165 = vmatpush1.xpose.msra.mxu0 0.0
    %166 = vmatprep.subr.mxu0 0.0
    %167 = vmatpush1.xpose.msra.mxu0 0.0
    %168 = vmatprep.subr.mxu0 0.0
    %169 = vmatpush1.xpose.msra.mxu0 0.0
    %170 = vmatprep.subr.mxu0 0.0
    %171 = vmatpush1.xpose.msra.mxu0 0.0
    %172 = vmatprep.subr.mxu0 0.0
    %173 = vmatpush1.xpose.msra.mxu0 0.0
    %174 = vmatprep.subr.mxu0 0.0
    %175 = vmatpush1.xpose.msra.mxu0 0.0
    %176 = vmatprep.subr.mxu0 0.0
    %177 = vmatpush1.xpose.msra.mxu0 0.0
    %178 = vmatprep.subr.mxu0 0.0
    %179 = vmatpush1.xpose.msra.mxu0 0.0
    %180 = vmatprep.subr.mxu0 0.0
    %181 = vmatpush1.xpose.msra.mxu0 0.0
    %182 = vmatprep.subr.mxu0 0.0
    %183 = vmatpush1.xpose.msra.mxu0 0.0
    %184 = vmatprep.subr.mxu0 0.0
    %185 = vmatpush1.xpose.msra.mxu0 0.0
    %186 = vmatprep.subr.mxu0 0.0
    %187 = vmatpush1.xpose.msra.mxu0 0.0
    %188 = vmatprep.subr.mxu0 0.0
    %189 = vmatpush1.xpose.msra.mxu0 0.0
    %190 = vmatprep.subr.mxu0 0.0
    %191 = vmatpush1.xpose.msra.mxu0 0.0
    %192 = vmatprep.subr.mxu0 0.0
    %193 = vmatpush1.xpose.msra.mxu0 0.0
    %194 = vmatprep.subr.mxu0 0.0
    %195 = vmatpush1.xpose.msra.mxu0 0.0
    %196 = vmatprep.subr.mxu0 0.0
    %197 = vmatpush1.xpose.msra.mxu0 0.0
    %198 = vmatprep.subr.mxu0 0.0
    %199 = vmatpush1.xpose.msra.mxu0 0.0
    %200 = vmatprep.subr.mxu0 0.0
    %201 = vmatpush1.xpose.msra.mxu0 0.0
    %202 = vmatprep.subr.mxu0 0.0
    %203 = vmatpush1.xpose.msra.mxu0 0.0
    %204 = vmatprep.subr.mxu0 0.0
    %205 = vmatpush1.xpose.msra.mxu0 0.0
    %206 = vmatprep.subr.mxu0 0.0
    %207 = vmatpush1.xpose.msra.mxu0 0.0
    %208 = vmatprep.mubr.f32.mxu0 0.0
    %209 = vmatmul.mubr.f32.gmra.mrb[0].mxu0 %v42
    %v210 = vpop.f32.mrb[0].mxu0
    %v211 = vadd.f32 0.0, %v210
    %v212 = vpop.f32.mrb[0].mxu0
    %213 = vmatprep.mubr.f32.mxu0 0.0
    %214 = vmatmul.mubr.f32.gmra.mrb[0].mxu0 %v45
    %v215 = vpop.f32.mrb[0].mxu0
    %v216 = vadd.f32 0.0, %v215
    %v217 = vpop.f32.mrb[0].mxu0
    %218 = vdwg.mxu0
    %v220 = vsel %vm40, %v30, 0
    %v223 = vsel %vm40, %v31, 0
    %225 = vmatprep.subr.mxu0 0.0
    %226 = vmatpush1.xpose.msra.mxu0 %v220
    %227 = vmatprep.subr.mxu0 0.0
    %228 = vmatpush1.xpose.msra.mxu0 %v223
    %229 = vmatprep.subr.mxu0 0.0
    %230 = vmatpush1.xpose.msra.mxu0 0.0
    %231 = vmatprep.subr.mxu0 0.0
    %232 = vmatpush1.xpose.msra.mxu0 0.0
    %233 = vmatprep.subr.mxu0 0.0
    %234 = vmatpush1.xpose.msra.mxu0 0.0
    %235 = vmatprep.subr.mxu0 0.0
    %236 = vmatpush1.xpose.msra.mxu0 0.0
    %237 = vmatprep.subr.mxu0 0.0
    %238 = vmatpush1.xpose.msra.mxu0 0.0
    %239 = vmatprep.subr.mxu0 0.0
    %240 = vmatpush1.xpose.msra.mxu0 0.0
    %241 = vmatprep.subr.mxu0 0.0
    %242 = vmatpush1.xpose.msra.mxu0 0.0
    %243 = vmatprep.subr.mxu0 0.0
    %244 = vmatpush1.xpose.msra.mxu0 0.0
    %245 = vmatprep.subr.mxu0 0.0
    %246 = vmatpush1.xpose.msra.mxu0 0.0
    %247 = vmatprep.subr.mxu0 0.0
    %248 = vmatpush1.xpose.msra.mxu0 0.0
    %249 = vmatprep.subr.mxu0 0.0
    %250 = vmatpush1.xpose.msra.mxu0 0.0
    %251 = vmatprep.subr.mxu0 0.0
    %252 = vmatpush1.xpose.msra.mxu0 0.0
    %253 = vmatprep.subr.mxu0 0.0
    %254 = vmatpush1.xpose.msra.mxu0 0.0
    %255 = vmatprep.subr.mxu0 0.0
    %256 = vmatpush1.xpose.msra.mxu0 0.0
    %257 = vmatprep.subr.mxu0 0.0
    %258 = vmatpush1.xpose.msra.mxu0 0.0
    %259 = vmatprep.subr.mxu0 0.0
    %260 = vmatpush1.xpose.msra.mxu0 0.0
    %261 = vmatprep.subr.mxu0 0.0
    %262 = vmatpush1.xpose.msra.mxu0 0.0
    %263 = vmatprep.subr.mxu0 0.0
    %264 = vmatpush1.xpose.msra.mxu0 0.0
    %265 = vmatprep.subr.mxu0 0.0
    %266 = vmatpush1.xpose.msra.mxu0 0.0
    %267 = vmatprep.subr.mxu0 0.0
    %268 = vmatpush1.xpose.msra.mxu0 0.0
    %269 = vmatprep.subr.mxu0 0.0
    %270 = vmatpush1.xpose.msra.mxu0 0.0
    %271 = vmatprep.subr.mxu0 0.0
    %272 = vmatpush1.xpose.msra.mxu0 0.0
    %273 = vmatprep.subr.mxu0 0.0
    %274 = vmatpush1.xpose.msra.mxu0 0.0
    %275 = vmatprep.subr.mxu0 0.0
    %276 = vmatpush1.xpose.msra.mxu0 0.0
    %277 = vmatprep.subr.mxu0 0.0
    %278 = vmatpush1.xpose.msra.mxu0 0.0
    %279 = vmatprep.subr.mxu0 0.0
    %280 = vmatpush1.xpose.msra.mxu0 0.0
    %281 = vmatprep.subr.mxu0 0.0
    %282 = vmatpush1.xpose.msra.mxu0 0.0
    %283 = vmatprep.subr.mxu0 0.0
    %284 = vmatpush1.xpose.msra.mxu0 0.0
    %285 = vmatprep.subr.mxu0 0.0
    %286 = vmatpush1.xpose.msra.mxu0 0.0
    %287 = vmatprep.subr.mxu0 0.0
    %288 = vmatpush1.xpose.msra.mxu0 0.0
    %289 = vmatprep.mubr.f32.mxu0 0.0
    %290 = vmatmul.mubr.f32.gmra.mrb[0].mxu0 %v48
    %v291 = vpop.f32.mrb[0].mxu0
    %v292 = vadd.f32 0.0, %v291
    %v293 = vpop.f32.mrb[0].mxu0
    %294 = vmatprep.mubr.f32.mxu0 0.0
    %295 = vmatmul.mubr.f32.gmra.mrb[0].mxu0 %v51
    %v296 = vpop.f32.mrb[0].mxu0
    %v297 = vadd.f32 0.0, %v296
    %v298 = vpop.f32.mrb[0].mxu0
    %299 = vdwg.mxu0
    %v300 = vtanh.pop %v120
    %v301 = vtanh.pop %v125
    %v302 = vtanh.pop %v130
    %v303 = vtanh.pop %v135
    %v304 = vtanh.pop %v211
    %v305 = vtanh.pop %v216
    %v306 = vtanh.pop %v292
    %v307 = vtanh.pop %v297
    %s308 = sld [smem:[#allocation2]]
    %s309 = sld [smem:[#allocation2 + $0x1]]
    %s310 = sld [smem:[#allocation2 + $0x2]]
    %v311 = vstv %s308
    %v312 = vmul.f32 %v311, %v300
    %v313 = vmul.f32 %v311, %v301
    %v314 = vmul.f32 %v311, %v302
    %v315 = vmul.f32 %v311, %v303
    %v316 = vstv %s309
    %v317 = vmul.f32 %v316, %v304
    %v318 = vmul.f32 %v316, %v305
    %v319 = vmul.f32 %v316, %v306
    %v320 = vmul.f32 %v316, %v307
    %v321 = vadd.f32 %v312, %v317
    %v322 = vadd.f32 %v313, %v318
    %v323 = vadd.f32 %v314, %v319
    %v324 = vadd.f32 %v315, %v320
    %v325 = vstv %s310
    %v326 = vadd.f32 %v321, %v325
    %v327 = vadd.f32 %v322, %v325
    %v328 = vadd.f32 %v323, %v325
    %v329 = vadd.f32 %v324, %v325
    %v330 = vmul.f32 %v326, 0.5
    %v331 = vmul.f32 %v327, 0.5
    %v332 = vmul.f32 %v328, 0.5
    %v333 = vmul.f32 %v329, 0.5
    %v334 = vtanh.pop %v330
    %v335 = vtanh.pop %v331
    %v336 = vtanh.pop %v332
    %v337 = vtanh.pop %v333
    %v338 = vmul.f32 %v334, 0.5
    %v339 = vmul.f32 %v335, 0.5
    %v340 = vmul.f32 %v336, 0.5
    %v341 = vmul.f32 %v337, 0.5
    %v342 = vadd.f32 %v338, 0.5
    %v343 = vadd.f32 %v339, 0.5
    %v344 = vadd.f32 %v340, 0.5
    %v345 = vadd.f32 %v341, 0.5
    %vm346 = vcmask 130048
    %347 = vst.msk [vmem:[#allocation5] sm:$0xff] %vm346, %v342
    %348 = vst.msk [vmem:[#allocation5 + $0x8] sm:$0xff] %vm346, %v343
    %349 = vst.msk [vmem:[#allocation5 + $0x10] sm:$0xff] %vm346, %v344
    %350 = vst.msk [vmem:[#allocation5 + $0x18] sm:$0xff] %vm346, %v345
    // Predicated region
    $region18: #{tpu_custom_call.1} parent=1 // pred_check
      _
    $region19: #{tpu_custom_call.1} parent=1 // pred_check_branch
      %352 = sbr.rel (0) target = $region21
    $region20: #{tpu_custom_call.1} parent=1 // pred_region
      %s354 = ssub.s32 512, 512
      %355 = vsyncadd [#allocation3], %s354
      %s356 = sshll.u32 [#allocation5], 4
      %s357 = int_to_ptr.vmem [resolvable:$true] %s356
      %362 = dma.vmem_to_hbm [thread:$0]  %s357, 512, %s3, [#allocation3], 128, 128, 8
    $region21: #{tpu_custom_call.1} parent=1 // pred_fallthru
      _
    // Predicated region
    $region22: #{tpu_custom_call.1} parent=1 // pred_check
      _
    $region23: #{tpu_custom_call.1} parent=1 // pred_check_branch
      %364 = sbr.rel (0) target = $region25
    $region24: #{tpu_custom_call.1} parent=1 // pred_region
      %365 = dma.done [#allocation3], 512
    $region25: #{tpu_custom_call.1} parent=1 // pred_fallthru
      _
    %366 = vsyncpa [#allocation3], 1
    %367 = vsyncpa [#allocation4], 1

</llo_original>
